<compile_context>
chip_gen: v6e
topology: v6e:2x2x1
jax: 0.10.0
libtpu: 0.0.40
codegen_flags: <defaults>
</compile_context>

<pallas_src>
import functools

import jax
import jax.numpy as jnp
from jax.experimental import pallas as pl
from jax.experimental.pallas import tpu as pltpu


def _round_up(v, m):
    return ((v + m - 1) // m) * m


def _res_block_kernel(x_ref, p_ref, o_ref, xs_ref, *,
                      L, pad, off, dilation, kernel_size, eps):
    # x_ref / o_ref: (N, C_TILE, L_pad) f32
    # p_ref:         (C_TILE, K+4)      f32   packed [w_dw | gamma | beta | w_pw | b_pw]
    # xs_ref: VMEM scratch (N, C_TILE, off + L_pad + pad) f32 -- reflection-padded signal,
    #         body stored lane-aligned at offset `off` (off is a multiple of 128).
    N, C_T, L_pad = x_ref.shape
    K = kernel_size
    x = x_ref[...]
    params = p_ref[...]                                     # (C_T, K+4)

    # --- build reflection-padded signal in VMEM scratch (uses the *real* L) ---
    if pad > 0:
        xs_ref[:, :, off:off + L_pad] = x                   # aligned full-tile store
        for i in range(pad):
            # left:  conv-input p=i          holds x[pad - i]   -> scratch index off - pad + i
            xs_ref[:, :, off - pad + i:off - pad + i + 1] = x[:, :, pad - i:pad - i + 1]
            # right: conv-input p=pad+L+i    holds x[L - 2 - i] -> scratch index off + L + i
            xs_ref[:, :, off + L + i:off + L + i + 1] = x[:, :, L - 2 - i:L - 1 - i]
        # zero the stale-but-readable tail (only feeds padded output lanes >= L)
        total = off + L_pad + pad
        written_end = off + max(L_pad, L + pad)
        if written_end < total:
            xs_ref[:, :, written_end:] = jnp.zeros((N, C_T, total - written_end), jnp.float32)

    # --- depthwise dilated conv (groups=dim, bias=False) ---
    kc = K // 2                                             # centre tap offset == pad -> equals x
    y = params[:, kc:kc + 1][None] * x                      # aligned, already in registers
    for k in range(K):
        if k == kc:
            continue
        start = off - pad + k * dilation
        y = y + params[:, k:k + 1][None] * xs_ref[:, :, start:start + L_pad]

    # --- BatchNorm1d (training-mode batch stats, biased variance) over (N, L) per channel ---
    if L_pad != L:
        lane = jax.lax.broadcasted_iota(jnp.int32, (N, C_T, L_pad), 2)
        valid = lane < L
        ym = jnp.where(valid, y, 0.0)
    else:
        valid = None
        ym = y
    inv_cnt = 1.0 / float(N * L)
    s1 = jnp.sum(jnp.sum(ym, axis=2, keepdims=True), axis=0, keepdims=True)
    mean = s1 * inv_cnt                                     # (1, C_T, 1)
    d = y - mean
    dm = jnp.where(valid, d, 0.0) if valid is not None else d
    s2 = jnp.sum(jnp.sum(dm * dm, axis=2, keepdims=True), axis=0, keepdims=True)
    var = s2 * inv_cnt                                      # biased variance (matches BN train)

    # --- fused BN affine + LeakyReLU(0.2) + grouped pointwise conv (k=1) + residual ---
    gamma = params[:, K:K + 1][None]                        # (1, C_T, 1)
    beta = params[:, K + 1:K + 2][None]
    wpw = params[:, K + 2:K + 3][None]
    bpw = params[:, K + 3:K + 4][None]

    scale = gamma * jax.lax.rsqrt(var + eps)
    bias = beta - mean * scale
    wpw_leak = wpw * 0.2

    ybn = y * scale + bias
    z = ybn * jnp.where(ybn >= 0.0, wpw, wpw_leak)
    o_ref[...] = x + z + bpw


def _choose_c_tile(C, N, L_pad, scratch_w, budget_bytes=24 * 2**20):
    """Channel tile: multiple-of-8 divisor of C (<=512) fitting the VMEM budget.

    Prefers >=2 grid steps (dual-TC sharding / pipelining) when blocks stay >=512 KiB.
    """
    candidates = [t for t in range(8, min(C, 512) + 1, 8) if C % t == 0]
    if not candidates:
        return C  # full-C block is always legal (block dim == full array dim)

    def footprint(t):
        blk = N * t * L_pad * 4
        scr = N * t * scratch_w * 4
        return 8 * blk + scr          # 2x in + 2x out bufs + ~4 live temporaries + scratch

    fitting = [t for t in candidates if footprint(t) <= budget_bytes]
    if not fitting:
        return candidates[0]
    multi = [t for t in fitting if C // t >= 2]
    if multi and N * multi[-1] * L_pad * 4 >= (1 << 19):
        return multi[-1]
    return fitting[-1]


def res_block_1d(x_ncl, w_dw, gamma, beta, w_pw, b_pw, *,
                 dilation=1, kernel_size=3, eps=1e-5, c_tile=None):
    """x_ncl: (N, C, L) like PyTorch Conv1d input. Returns (N, C, L) float32."""
    N, C, L = x_ncl.shape
    K = kernel_size
    assert K % 2 == 1, "ResBlock1d residual add requires odd kernel_size"
    pad = dilation * (K // 2)
    assert L > pad, "ReflectionPad1d requires L > pad"

    L_pad = _round_up(L, 128)                               # lane-dense stores
    off = _round_up(pad, 128) if pad > 0 else 0             # aligned body offset in scratch
    scratch_w = off + L_pad + pad

    x = x_ncl.astype(jnp.float32)
    if L_pad != L:
        x = jnp.pad(x, ((0, 0), (0, 0), (0, L_pad - L)))

    # Pack all per-channel params into one (C, K+4) array: [w_dw | gamma | beta | w_pw | b_pw]
    params = jnp.concatenate([
        jnp.reshape(w_dw, (C, K)).astype(jnp.float32),
        jnp.reshape(gamma, (C, 1)).astype(jnp.float32),
        jnp.reshape(beta, (C, 1)).astype(jnp.float32),
        jnp.reshape(w_pw, (C, 1)).astype(jnp.float32),
        jnp.reshape(b_pw, (C, 1)).astype(jnp.float32),
    ], axis=1)

    if c_tile is None:
        c_tile = _choose_c_tile(C, N, L_pad, scratch_w)
    assert C % c_tile == 0
    grid = (C // c_tile,)

    blk = N * c_tile * L_pad * 4
    scr = N * c_tile * scratch_w * 4
    vmem_limit = int(min(64 * 2**20, max(4 * 2**20, 8 * blk + scr + (2 << 20))))

    kernel = functools.partial(_res_block_kernel, L=L, pad=pad, off=off,
                               dilation=dilation, kernel_size=K, eps=eps)

    out = pl.pallas_call(
        kernel,
        grid=grid,
        in_specs=[pl.BlockSpec((N, c_tile, L_pad), lambda c: (0, c, 0)),
                  pl.BlockSpec((c_tile, K + 4), lambda c: (c, 0))],
        out_specs=pl.BlockSpec((N, c_tile, L_pad), lambda c: (0, c, 0)),
        out_shape=jax.ShapeDtypeStruct((N, C, L_pad), jnp.float32),
        scratch_shapes=[pltpu.VMEM((N, c_tile, scratch_w), jnp.float32)],
        compiler_params=pltpu.CompilerParams(
            dimension_semantics=("parallel",),
            vmem_limit_bytes=vmem_limit),
    )(x, params)
    return out[:, :, :L]


def _reference(x, w_dw, gamma, beta, w_pw, b_pw, dilation, kernel_size, eps):
    # Pure-JAX reference mirroring the PyTorch forward (training-mode BN).
    N, C, L = x.shape
    pad = dilation * (kernel_size // 2)
    xp = jnp.pad(x, ((0, 0), (0, 0), (pad, pad)), mode="reflect")
    y = jnp.zeros((N, C, L), jnp.float32)
    for k in range(kernel_size):
        y = y + w_dw[:, 0, k][None, :, None] * xp[:, :, k * dilation:k * dilation + L]
    mean = jnp.mean(y, axis=(0, 2), keepdims=True)
    var = jnp.mean((y - mean) ** 2, axis=(0, 2), keepdims=True)
    ybn = (y - mean) / jnp.sqrt(var + eps) * gamma[None, :, None] + beta[None, :, None]
    act = jnp.where(ybn >= 0, ybn, 0.2 * ybn)
    z = act * w_pw[:, 0, 0][None, :, None] + b_pw[None, :, None]
    return x + z


# TODO(synk): BatchNorm1d running-stats (running_mean/var momentum update) is a training-time
# buffer update and does not affect the forward output; it is not implemented here.

if __name__ == "__main__":
    def run_case(N, C, L, dilation, kernel_size, c_tile, key):
        ks = jax.random.split(key, 6)
        x = jax.random.normal(ks[0], (N, C, L), jnp.float32)
        w_dw = jax.random.normal(ks[1], (C, 1, kernel_size), jnp.float32) * 0.3
        gamma = 1.0 + 0.1 * jax.random.normal(ks[2], (C,), jnp.float32)
        beta = 0.1 * jax.random.normal(ks[3], (C,), jnp.float32)
        w_pw = jax.random.normal(ks[4], (C, 1, 1), jnp.float32) * 0.3
        b_pw = 0.1 * jax.random.normal(ks[5], (C,), jnp.float32)

        out = res_block_1d(x, w_dw, gamma, beta, w_pw, b_pw,
                           dilation=dilation, kernel_size=kernel_size, c_tile=c_tile)
        out = jax.block_until_ready(out)
        ref = _reference(x, w_dw, gamma, beta, w_pw, b_pw, dilation, kernel_size, 1e-5)
        assert out.shape == (N, C, L)
        assert jnp.allclose(out, ref, rtol=1e-5, atol=1e-4), \
            f"mismatch N={N} C={C} L={L} dil={dilation}"

    key = jax.random.PRNGKey(0)
    k1, k2, k3 = jax.random.split(key, 3)
    run_case(2, 16, 48, 1, 3, None, k1)   # L padded to 128 (masked BN stats), single channel block
    run_case(2, 32, 40, 3, 3, 8, k2)      # dilation=3 (pad=3), 4-step channel grid, masked lanes
    run_case(1, 8, 128, 2, 3, None, k3)   # lane-dense L (no masking path), dilation=2
    print("KERNEL_OK")
</pallas_src>

<mosaic_0001>
module attributes {stable_mosaic.version = 11 : i64} {
  func.func @_res_block_kernel(%arg0: i32, %arg1: memref<2x16x128xf32, #tpu.memory_space<vmem>>, %arg2: memref<16x7xf32, #tpu.memory_space<vmem>>, %arg3: memref<2x16x128xf32, #tpu.memory_space<vmem>>, %arg4: memref<2x16x257xf32, #tpu.memory_space<vmem>>) attributes {dimension_semantics = [#tpu.dimension_semantics<parallel>], iteration_bounds = array<i64: 1>, scalar_prefetch = 0 : i64, scratch_operands = 1 : i64, tpu.core_type = #tpu.core_type<tc>, window_params = [{transform_indices = @transform_0, window_bounds = array<i64: 2, 16, 128>}, {transform_indices = @transform_1, window_bounds = array<i64: 16, 7>}, {transform_indices = @transform_2, window_bounds = array<i64: 2, 16, 128>}]} {
    %c0 = arith.constant 0 : index
    %c0_0 = arith.constant 0 : index
    %c0_1 = arith.constant 0 : index
    %0 = vector.load %arg1[%c0, %c0_0, %c0_1] : memref<2x16x128xf32, #tpu.memory_space<vmem>>, vector<2x16x128xf32>
    %c0_2 = arith.constant 0 : index
    %c0_3 = arith.constant 0 : index
    %1 = vector.load %arg2[%c0_2, %c0_3] : memref<16x7xf32, #tpu.memory_space<vmem>>, vector<16x7xf32>
    %c0_4 = arith.constant 0 : index
    %c0_5 = arith.constant 0 : index
    %c128 = arith.constant 128 : index
    %2 = vector.load %arg4[%c0_4, %c0_5, %c128] : memref<2x16x257xf32, #tpu.memory_space<vmem>>, vector<2x16x128xf32>
    tpu.vector_store %arg4[%c0_4, %c0_5, %c128], %0 {strides = array<i32>} : memref<2x16x257xf32, #tpu.memory_space<vmem>>, vector<2x16x128xf32>,
    %3 = vector.extract_strided_slice %0 {offsets = [0, 0, 1], sizes = [2, 16, 1], strides = [1, 1, 1]} : vector<2x16x128xf32> to vector<2x16x1xf32>
    %c0_6 = arith.constant 0 : index
    %c0_7 = arith.constant 0 : index
    %c127 = arith.constant 127 : index
    %4 = vector.load %arg4[%c0_6, %c0_7, %c127] : memref<2x16x257xf32, #tpu.memory_space<vmem>>, vector<2x16x1xf32>
    tpu.vector_store %arg4[%c0_6, %c0_7, %c127], %3 {strides = array<i32>} : memref<2x16x257xf32, #tpu.memory_space<vmem>>, vector<2x16x1xf32>,
    %5 = vector.extract_strided_slice %0 {offsets = [0, 0, 46], sizes = [2, 16, 1], strides = [1, 1, 1]} : vector<2x16x128xf32> to vector<2x16x1xf32>
    %c0_8 = arith.constant 0 : index
    %c0_9 = arith.constant 0 : index
    %c176 = arith.constant 176 : index
    %6 = vector.load %arg4[%c0_8, %c0_9, %c176] : memref<2x16x257xf32, #tpu.memory_space<vmem>>, vector<2x16x1xf32>
    tpu.vector_store %arg4[%c0_8, %c0_9, %c176], %5 {strides = array<i32>} : memref<2x16x257xf32, #tpu.memory_space<vmem>>, vector<2x16x1xf32>,
    %cst = arith.constant 0.000000e+00 : f32
    %7 = vector.broadcast %cst : f32 to vector<2x16x1xf32>
    %c0_10 = arith.constant 0 : index
    %c0_11 = arith.constant 0 : index
    %c256 = arith.constant 256 : index
    %8 = vector.load %arg4[%c0_10, %c0_11, %c256] : memref<2x16x257xf32, #tpu.memory_space<vmem>>, vector<2x16x1xf32>
    tpu.vector_store %arg4[%c0_10, %c0_11, %c256], %7 {strides = array<i32>} : memref<2x16x257xf32, #tpu.memory_space<vmem>>, vector<2x16x1xf32>,
    %9 = vector.extract_strided_slice %1 {offsets = [0, 1], sizes = [16, 1], strides = [1, 1]} : vector<16x7xf32> to vector<16x1xf32>
    %10 = vector.shape_cast %9 : vector<16x1xf32> to vector<1x16x1xf32>
    %11 = vector.broadcast %10 : vector<1x16x1xf32> to vector<2x16x128xf32>
    %12 = arith.mulf %11, %0 : vector<2x16x128xf32>
    %13 = vector.extract_strided_slice %1 {offsets = [0, 0], sizes = [16, 1], strides = [1, 1]} : vector<16x7xf32> to vector<16x1xf32>
    %14 = vector.shape_cast %13 : vector<16x1xf32> to vector<1x16x1xf32>
    %c0_12 = arith.constant 0 : index
    %c0_13 = arith.constant 0 : index
    %c127_14 = arith.constant 127 : index
    %15 = vector.load %arg4[%c0_12, %c0_13, %c127_14] : memref<2x16x257xf32, #tpu.memory_space<vmem>>, vector<2x16x128xf32>
    %16 = vector.broadcast %14 : vector<1x16x1xf32> to vector<2x16x128xf32>
    %17 = arith.mulf %16, %15 : vector<2x16x128xf32>
    %18 = arith.addf %12, %17 : vector<2x16x128xf32>
    %19 = vector.extract_strided_slice %1 {offsets = [0, 2], sizes = [16, 1], strides = [1, 1]} : vector<16x7xf32> to vector<16x1xf32>
    %20 = vector.shape_cast %19 : vector<16x1xf32> to vector<1x16x1xf32>
    %c0_15 = arith.constant 0 : index
    %c0_16 = arith.constant 0 : index
    %c129 = arith.constant 129 : index
    %21 = vector.load %arg4[%c0_15, %c0_16, %c129] : memref<2x16x257xf32, #tpu.memory_space<vmem>>, vector<2x16x128xf32>
    %22 = vector.broadcast %20 : vector<1x16x1xf32> to vector<2x16x128xf32>
    %23 = arith.mulf %22, %21 : vector<2x16x128xf32>
    %24 = arith.addf %18, %23 : vector<2x16x128xf32>
    %25 = tpu.iota {dimensions = array<i32: 2>} : vector<2x16x128xi32>
    %c48_i32 = arith.constant 48 : i32
    %26 = vector.broadcast %c48_i32 : i32 to vector<2x16x128xi32>
    %27 = arith.cmpi slt, %25, %26 : vector<2x16x128xi32>
    %cst_17 = arith.constant 0.000000e+00 : f32
    %28 = vector.broadcast %cst_17 : f32 to vector<2x16x128xf32>
    %29 = arith.select %27, %24, %28 : vector<2x16x128xi1>, vector<2x16x128xf32>
    %cst_18 = arith.constant dense<0.000000e+00> : vector<2x16xf32>
    %30 = vector.multi_reduction <add>, %29, %cst_18 [2] : vector<2x16x128xf32> to vector<2x16xf32>
    %31 = vector.shape_cast %30 : vector<2x16xf32> to vector<2x16x1xf32>
    %cst_19 = arith.constant dense<0.000000e+00> : vector<16x1xf32>
    %32 = vector.multi_reduction <add>, %31, %cst_19 [0] : vector<2x16x1xf32> to vector<16x1xf32>
    %33 = vector.shape_cast %32 : vector<16x1xf32> to vector<1x16x1xf32>
    %cst_20 = arith.constant 0.010416667 : f32
    %34 = vector.broadcast %cst_20 : f32 to vector<1x16x1xf32>
    %35 = arith.mulf %33, %34 : vector<1x16x1xf32>
    %36 = vector.broadcast %35 : vector<1x16x1xf32> to vector<2x16x128xf32>
    %37 = arith.subf %24, %36 : vector<2x16x128xf32>
    %cst_21 = arith.constant 0.000000e+00 : f32
    %38 = vector.broadcast %cst_21 : f32 to vector<2x16x128xf32>
    %39 = arith.select %27, %37, %38 : vector<2x16x128xi1>, vector<2x16x128xf32>
    %40 = arith.mulf %39, %39 : vector<2x16x128xf32>
    %cst_22 = arith.constant dense<0.000000e+00> : vector<2x16xf32>
    %41 = vector.multi_reduction <add>, %40, %cst_22 [2] : vector<2x16x128xf32> to vector<2x16xf32>
    %42 = vector.shape_cast %41 : vector<2x16xf32> to vector<2x16x1xf32>
    %cst_23 = arith.constant dense<0.000000e+00> : vector<16x1xf32>
    %43 = vector.multi_reduction <add>, %42, %cst_23 [0] : vector<2x16x1xf32> to vector<16x1xf32>
    %44 = vector.shape_cast %43 : vector<16x1xf32> to vector<1x16x1xf32>
    %cst_24 = arith.constant 0.010416667 : f32
    %45 = vector.broadcast %cst_24 : f32 to vector<1x16x1xf32>
    %46 = arith.mulf %44, %45 : vector<1x16x1xf32>
    %47 = vector.extract_strided_slice %1 {offsets = [0, 3], sizes = [16, 1], strides = [1, 1]} : vector<16x7xf32> to vector<16x1xf32>
    %48 = vector.shape_cast %47 : vector<16x1xf32> to vector<1x16x1xf32>
    %49 = vector.extract_strided_slice %1 {offsets = [0, 4], sizes = [16, 1], strides = [1, 1]} : vector<16x7xf32> to vector<16x1xf32>
    %50 = vector.shape_cast %49 : vector<16x1xf32> to vector<1x16x1xf32>
    %51 = vector.extract_strided_slice %1 {offsets = [0, 5], sizes = [16, 1], strides = [1, 1]} : vector<16x7xf32> to vector<16x1xf32>
    %52 = vector.shape_cast %51 : vector<16x1xf32> to vector<1x16x1xf32>
    %53 = vector.extract_strided_slice %1 {offsets = [0, 6], sizes = [16, 1], strides = [1, 1]} : vector<16x7xf32> to vector<16x1xf32>
    %54 = vector.shape_cast %53 : vector<16x1xf32> to vector<1x16x1xf32>
    %cst_25 = arith.constant 9.99999974E-6 : f32
    %55 = vector.broadcast %cst_25 : f32 to vector<1x16x1xf32>
    %56 = arith.addf %46, %55 : vector<1x16x1xf32>
    %57 = math.rsqrt %56 : vector<1x16x1xf32>
    %58 = arith.mulf %48, %57 : vector<1x16x1xf32>
    %59 = arith.mulf %35, %58 : vector<1x16x1xf32>
    %60 = arith.subf %50, %59 : vector<1x16x1xf32>
    %cst_26 = arith.constant 2.000000e-01 : f32
    %61 = vector.broadcast %cst_26 : f32 to vector<1x16x1xf32>
    %62 = arith.mulf %52, %61 : vector<1x16x1xf32>
    %63 = vector.broadcast %58 : vector<1x16x1xf32> to vector<2x16x128xf32>
    %64 = arith.mulf %24, %63 : vector<2x16x128xf32>
    %65 = vector.broadcast %60 : vector<1x16x1xf32> to vector<2x16x128xf32>
    %66 = arith.addf %64, %65 : vector<2x16x128xf32>
    %cst_27 = arith.constant 0.000000e+00 : f32
    %67 = vector.broadcast %cst_27 : f32 to vector<2x16x128xf32>
    %68 = arith.cmpf oge, %66, %67 : vector<2x16x128xf32>
    %69 = vector.shape_cast %52 : vector<1x16x1xf32> to vector<1x16x1xf32>
    %70 = vector.broadcast %69 : vector<1x16x1xf32> to vector<2x16x128xf32>
    %71 = vector.shape_cast %62 : vector<1x16x1xf32> to vector<1x16x1xf32>
    %72 = vector.broadcast %71 : vector<1x16x1xf32> to vector<2x16x128xf32>
    %73 = arith.select %68, %70, %72 : vector<2x16x128xi1>, vector<2x16x128xf32>
    %74 = arith.mulf %66, %73 : vector<2x16x128xf32>
    %75 = arith.addf %0, %74 : vector<2x16x128xf32>
    %76 = vector.broadcast %54 : vector<1x16x1xf32> to vector<2x16x128xf32>
    %77 = arith.addf %75, %76 : vector<2x16x128xf32>
    %c0_28 = arith.constant 0 : index
    %c0_29 = arith.constant 0 : index
    %c0_30 = arith.constant 0 : index
    %78 = vector.load %arg3[%c0_28, %c0_29, %c0_30] : memref<2x16x128xf32, #tpu.memory_space<vmem>>, vector<2x16x128xf32>
    tpu.vector_store %arg3[%c0_28, %c0_29, %c0_30], %77 {strides = array<i32>} : memref<2x16x128xf32, #tpu.memory_space<vmem>>, vector<2x16x128xf32>,
    return
  }
  func.func @transform_0(%arg0: i32) -> (i32, i32, i32) {
    %c0_i32 = arith.constant 0 : i32
    %c0_i32_0 = arith.constant 0 : i32
    %c0_i32_1 = arith.constant 0 : i32
    return %c0_i32, %arg0, %c0_i32_0 : i32, i32, i32
  }
  func.func @transform_1(%arg0: i32) -> (i32, i32) {
    %c0_i32 = arith.constant 0 : i32
    %c0_i32_0 = arith.constant 0 : i32
    return %arg0, %c0_i32 : i32, i32
  }
  func.func @transform_2(%arg0: i32) -> (i32, i32, i32) {
    %c0_i32 = arith.constant 0 : i32
    %c0_i32_0 = arith.constant 0 : i32
    %c0_i32_1 = arith.constant 0 : i32
    return %c0_i32, %arg0, %c0_i32_0 : i32, i32, i32
  }
}

</mosaic_0001>

<llo_original>
// kernel: tpu_custom_call.1
$region0: #{tpu_custom_call.1}
  #allocation0 [shape = 'u32[]', space=smem, size = 0x4, offset = 0x4, fixed_abs, tag = 'smem constant byte address 0x4 - core index']
  #allocation1 [shape = 'u32[144,128]{1,0:T(1,128)}', space=vmem, size = 0x12000, scoped, tag = 'internal scratch']
  #allocation2 [shape = 'f32[2,16,257]{2,1,0:T(8,128)}', space=vmem, size = 0xc000, scoped, tag = 'scratch operand']
  %s0 = inlined_call_operand.hbm [shape: f32[2,16,128], index: 0, kind: input, shape index: {}]
  %s1 = inlined_call_operand.vmem [shape: f32[16,7], index: 1, kind: input, shape index: {}]
  %s2 = inlined_call_operand.hbm [shape: f32[2,16,128], index: 2, kind: output, shape index: {}]
  %s3 = sld [smem:[#allocation0]]
  $region22: #{tpu_custom_call.1} parent=0
    _
  %s5 = ssub.s32 1, %s3
  %s6 = scalar_select 0, %s5, %s3
  $region1: #{tpu_custom_call.1} parent=0
    #allocation3 [shape = 'u8[16384]{0}', space=vmem, size = 0x4000, scoped, tag = 'input window, operand 0, single buffered']
    #allocation4 [shape = 's32[1]{0}', space=sflag, size = 0x4, scoped, tag = 'scoped memory for tpu_custom_call.1']
    #allocation5 [shape = 's32[1]{0}', space=sflag, size = 0x4, scoped, tag = 'scoped memory for tpu_custom_call.1']
    #allocation6 [shape = 'u8[16384]{0}', space=vmem, size = 0x4000, scoped, tag = 'output window, operand 0, single buffered']
    %7 = vsyncpa [#allocation4], 0
    %8 = vsyncpa [#allocation5], 0
    // Predicated region
    $region2: #{tpu_custom_call.1} parent=1 // pred_check
      _
    $region3: #{tpu_custom_call.1} parent=1 // pred_check_branch
      %10 = sbr.rel (0) target = $region5
    $region4: #{tpu_custom_call.1} parent=1 // pred_region
      %s12 = ssub.s32 512, 512
      %13 = vsyncadd [#allocation4], %s12
      %s14 = sshll.u32 [#allocation3], 4
      %s15 = int_to_ptr.vmem [resolvable:$true] %s14
      %20 = dma.hbm_to_vmem [thread:$0]  %s0, 512, %s15, [#allocation4], 128, 128, 8
    $region5: #{tpu_custom_call.1} parent=1 // pred_fallthru
      _
    // Predicated region
    $region6: #{tpu_custom_call.1} parent=1 // pred_check
      _
    $region7: #{tpu_custom_call.1} parent=1 // pred_check_branch
      %22 = sbr.rel (0) target = $region9
    $region8: #{tpu_custom_call.1} parent=1 // pred_region
      _
    $region9: #{tpu_custom_call.1} parent=1 // pred_fallthru
      _
    // Predicated region
    $region10: #{tpu_custom_call.1} parent=1 // pred_check
      _
    $region11: #{tpu_custom_call.1} parent=1 // pred_check_branch
      %24 = sbr.rel (0) target = $region13
    $region12: #{tpu_custom_call.1} parent=1 // pred_region
      %25 = dma.done [#allocation4], 512
    $region13: #{tpu_custom_call.1} parent=1 // pred_fallthru
      _
    %v26 = vld [vmem:[#allocation3] sm:$0xff]
    %v27 = vld [vmem:[#allocation3 + $0x8] sm:$0xff]
    %v28 = vld [vmem:[#allocation3 + $0x10] sm:$0xff]
    %v29 = vld [vmem:[#allocation3 + $0x18] sm:$0xff]
    %v30 = vld [vmem:[%s1] sm:$0xff]
    %v31 = vld [vmem:[%s1 + $0x8] sm:$0xff]
    %32 = vst [vmem:[#allocation2 + $0x8] sm:$0xff] %v26
    %33 = vst [vmem:[#allocation2 + $0x20] sm:$0xff] %v27
    %34 = vst [vmem:[#allocation2 + $0x38] sm:$0xff] %v28
    %35 = vst [vmem:[#allocation2 + $0x50] sm:$0xff] %v29
    %40 = vrot.lane.b32.xlu0 %v26, 126
    %v41 = vpop.permute.xlu0 %40
    %42 = vrot.lane.b32.xlu0 %v27, 126
    %v43 = vpop.permute.xlu0 %42
    %44 = vrot.lane.b32.xlu0 %v28, 126
    %v45 = vpop.permute.xlu0 %44
    %46 = vrot.lane.b32.xlu0 %v29, 126
    %v47 = vpop.permute.xlu0 %46
    %vm52 = vcmask 1048568
    %53 = vst.msk [vmem:[#allocation2] sm:$0xff] %vm52, %v41
    %54 = vst.msk [vmem:[#allocation2 + $0x18] sm:$0xff] %vm52, %v43
    %55 = vst.msk [vmem:[#allocation2 + $0x30] sm:$0xff] %vm52, %v45
    %56 = vst.msk [vmem:[#allocation2 + $0x48] sm:$0xff] %vm52, %v47
    %57 = vrot.lane.b32.xlu0 %v26, 2
    %v58 = vpop.permute.xlu0 %57
    %59 = vrot.lane.b32.xlu0 %v27, 2
    %v60 = vpop.permute.xlu0 %59
    %61 = vrot.lane.b32.xlu0 %v28, 2
    %v62 = vpop.permute.xlu0 %61
    %63 = vrot.lane.b32.xlu0 %v29, 2
    %v64 = vpop.permute.xlu0 %63
    %vm69 = vcmask 400768
    %70 = vst.msk [vmem:[#allocation2 + $0x8] sm:$0xff] %vm69, %v58
    %71 = vst.msk [vmem:[#allocation2 + $0x20] sm:$0xff] %vm69, %v60
    %72 = vst.msk [vmem:[#allocation2 + $0x38] sm:$0xff] %vm69, %v62
    %73 = vst.msk [vmem:[#allocation2 + $0x50] sm:$0xff] %vm69, %v64
    %vm74 = vcmask 7168
    %75 = vst.msk [vmem:[#allocation2 + $0x10] sm:$0xff] %vm74, 0.0
    %76 = vst.msk [vmem:[#allocation2 + $0x28] sm:$0xff] %vm74, 0.0
    %77 = vst.msk [vmem:[#allocation2 + $0x40] sm:$0xff] %vm74, 0.0
    %78 = vst.msk [vmem:[#allocation2 + $0x58] sm:$0xff] %vm74, 0.0
    %80 = vset.pattern.permute.xlu0 1
    %81 = vperm.xlu0 %80, %v30
    %v82 = vpop.permute.xlu0 %81
    %85 = vset.pattern.permute.xlu0 1
    %86 = vperm.xlu0 %85, %v31
    %v87 = vpop.permute.xlu0 %86
    %v89 = vmul.f32 %v82, %v26
    %v90 = vmul.f32 %v87, %v27
    %v91 = vmul.f32 %v82, %v28
    %v92 = vmul.f32 %v87, %v29
    %v93 = vld [vmem:[#allocation2] sm:$0xff]
    %v94 = vld [vmem:[#allocation2 + $0x8] sm:$0xff]
    %v95 = vld [vmem:[#allocation2 + $0x18] sm:$0xff]
    %v96 = vld [vmem:[#allocation2 + $0x20] sm:$0xff]
    %v97 = vld [vmem:[#allocation2 + $0x30] sm:$0xff]
    %v98 = vld [vmem:[#allocation2 + $0x38] sm:$0xff]
    %v99 = vld [vmem:[#allocation2 + $0x48] sm:$0xff]
    %v100 = vld [vmem:[#allocation2 + $0x50] sm:$0xff]
    %101 = vset.pattern.permute.xlu0 0
    %102 = vperm.xlu0 %101, %v30
    %v103 = vpop.permute.xlu0 %102
    %105 = vset.pattern.permute.xlu0 0
    %106 = vperm.xlu0 %105, %v31
    %v107 = vpop.permute.xlu0 %106
    %v109 = vmul.f32 %v103, %v93
    %v110 = vmul.f32 %v103, %v94
    %v111 = vmul.f32 %v107, %v95
    %v112 = vmul.f32 %v107, %v96
    %v113 = vmul.f32 %v103, %v97
    %v114 = vmul.f32 %v103, %v98
    %v115 = vmul.f32 %v107, %v99
    %v116 = vmul.f32 %v107, %v100
    %125 = vrot.lane.b32.xlu0 %v109, 1
    %v126 = vpop.permute.xlu0 %125
    %127 = vrot.lane.b32.xlu0 %v110, 1
    %v128 = vpop.permute.xlu0 %127
    %129 = vrot.lane.b32.xlu0 %v111, 1
    %v130 = vpop.permute.xlu0 %129
    %131 = vrot.lane.b32.xlu0 %v112, 1
    %v132 = vpop.permute.xlu0 %131
    %133 = vrot.lane.b32.xlu0 %v113, 1
    %v134 = vpop.permute.xlu0 %133
    %135 = vrot.lane.b32.xlu0 %v114, 1
    %v136 = vpop.permute.xlu0 %135
    %137 = vrot.lane.b32.xlu0 %v115, 1
    %v138 = vpop.permute.xlu0 %137
    %139 = vrot.lane.b32.xlu0 %v116, 1
    %v140 = vpop.permute.xlu0 %139
    %v141 = vsel %vm74, %v126, %v128
    %v142 = vsel %vm74, %v130, %v132
    %v143 = vsel %vm74, %v134, %v136
    %v144 = vsel %vm74, %v138, %v140
    %v149 = vadd.f32 %v89, %v141
    %v150 = vadd.f32 %v90, %v142
    %v151 = vadd.f32 %v91, %v143
    %v152 = vadd.f32 %v92, %v144
    %v153 = vld [vmem:[#allocation2 + $0x8] sm:$0xff]
    %v154 = vld [vmem:[#allocation2 + $0x10] sm:$0xff]
    %v155 = vld [vmem:[#allocation2 + $0x20] sm:$0xff]
    %v156 = vld [vmem:[#allocation2 + $0x28] sm:$0xff]
    %v157 = vld [vmem:[#allocation2 + $0x38] sm:$0xff]
    %v158 = vld [vmem:[#allocation2 + $0x40] sm:$0xff]
    %v159 = vld [vmem:[#allocation2 + $0x50] sm:$0xff]
    %v160 = vld [vmem:[#allocation2 + $0x58] sm:$0xff]
    %161 = vset.pattern.permute.xlu0 2
    %162 = vperm.xlu0 %161, %v30
    %v163 = vpop.permute.xlu0 %162
    %165 = vset.pattern.permute.xlu0 2
    %166 = vperm.xlu0 %165, %v31
    %v167 = vpop.permute.xlu0 %166
    %v169 = vmul.f32 %v163, %v153
    %v170 = vmul.f32 %v163, %v154
    %v171 = vmul.f32 %v167, %v155
    %v172 = vmul.f32 %v167, %v156
    %v173 = vmul.f32 %v163, %v157
    %v174 = vmul.f32 %v163, %v158
    %v175 = vmul.f32 %v167, %v159
    %v176 = vmul.f32 %v167, %v160
    %185 = vrot.lane.b32.xlu0 %v169, 127
    %v186 = vpop.permute.xlu0 %185
    %187 = vrot.lane.b32.xlu0 %v170, 127
    %v188 = vpop.permute.xlu0 %187
    %189 = vrot.lane.b32.xlu0 %v171, 127
    %v190 = vpop.permute.xlu0 %189
    %191 = vrot.lane.b32.xlu0 %v172, 127
    %v192 = vpop.permute.xlu0 %191
    %193 = vrot.lane.b32.xlu0 %v173, 127
    %v194 = vpop.permute.xlu0 %193
    %195 = vrot.lane.b32.xlu0 %v174, 127
    %v196 = vpop.permute.xlu0 %195
    %197 = vrot.lane.b32.xlu0 %v175, 127
    %v198 = vpop.permute.xlu0 %197
    %199 = vrot.lane.b32.xlu0 %v176, 127
    %v200 = vpop.permute.xlu0 %199
    %vm201 = vcmask 1039360
    %v202 = vsel %vm201, %v186, %v188
    %v203 = vsel %vm201, %v190, %v192
    %v204 = vsel %vm201, %v194, %v196
    %v205 = vsel %vm201, %v198, %v200
    %v210 = vadd.f32 %v149, %v202
    %v211 = vadd.f32 %v150, %v203
    %v212 = vadd.f32 %v151, %v204
    %v213 = vadd.f32 %v152, %v205
    %v214 = vlaneseq
    %v215 = vand.u32 %v214, 127
    %vm216 = vcmp.lt.s32.totalorder %v215, 48
    %v217 = vsel %vm216, %v210, 0.0
    %v218 = vsel %vm216, %v211, 0.0
    %v219 = vsel %vm216, %v212, 0.0
    %v220 = vsel %vm216, %v213, 0.0
    %221 = vadd.xlane.f32.xlu0 %v217
    %v222 = vpop.xlane.xlu0 %221
    %223 = vadd.xlane.f32.xlu0 %v218
    %v224 = vpop.xlane.xlu0 %223
    %225 = vadd.xlane.f32.xlu0 %v219
    %v226 = vpop.xlane.xlu0 %225
    %227 = vadd.xlane.f32.xlu0 %v220
    %v228 = vpop.xlane.xlu0 %227
    %v229 = vadd.f32 %v222, %v226
    %v230 = vadd.f32 %v224, %v228
    %v231 = vmul.f32 %v229, 0.010416667
    %v232 = vmul.f32 %v230, 0.010416667
    %v233 = vsub.f32 %v210, %v231
    %v234 = vsub.f32 %v211, %v232
    %v235 = vsub.f32 %v212, %v231
    %v236 = vsub.f32 %v213, %v232
    %v237 = vsel %vm216, %v233, 0.0
    %v238 = vsel %vm216, %v234, 0.0
    %v239 = vsel %vm216, %v235, 0.0
    %v240 = vsel %vm216, %v236, 0.0
    %v241 = vmul.f32 %v237, %v237
    %v242 = vmul.f32 %v238, %v238
    %v243 = vmul.f32 %v239, %v239
    %v244 = vmul.f32 %v240, %v240
    %245 = vadd.xlane.f32.xlu0 %v241
    %v246 = vpop.xlane.xlu0 %245
    %247 = vadd.xlane.f32.xlu0 %v242
    %v248 = vpop.xlane.xlu0 %247
    %249 = vadd.xlane.f32.xlu0 %v243
    %v250 = vpop.xlane.xlu0 %249
    %251 = vadd.xlane.f32.xlu0 %v244
    %v252 = vpop.xlane.xlu0 %251
    %v253 = vadd.f32 %v246, %v250
    %v254 = vadd.f32 %v248, %v252
    %v255 = vmul.f32 %v253, 0.010416667
    %v256 = vmul.f32 %v254, 0.010416667
    %v257 = vadd.f32 %v255, 1e-05
    %v258 = vadd.f32 %v256, 1e-05
    %v259 = vrsqrt.pop %v257
    %v260 = vrsqrt.pop %v258
    %v261 = vmul.f32 %v30, %v259
    %v262 = vmul.f32 %v31, %v260
    %v263 = vmul.f32 %v231, %v261
    %v264 = vmul.f32 %v232, %v262
    %267 = vrot.lane.b32.xlu0 %v263, 1
    %v268 = vpop.permute.xlu0 %267
    %269 = vrot.lane.b32.xlu0 %v264, 1
    %v270 = vpop.permute.xlu0 %269
    %v273 = vsub.f32 %v30, %v268
    %v274 = vsub.f32 %v31, %v270
    %v275 = vmul.f32 %v30, 0.2
    %v276 = vmul.f32 %v31, 0.2
    %278 = vset.pattern.permute.xlu0 3
    %279 = vperm.xlu0 %278, %v261
    %v280 = vpop.permute.xlu0 %279
    %283 = vset.pattern.permute.xlu0 3
    %284 = vperm.xlu0 %283, %v262
    %v285 = vpop.permute.xlu0 %284
    %v287 = vmul.f32 %v210, %v280
    %v288 = vmul.f32 %v211, %v285
    %v289 = vmul.f32 %v212, %v280
    %v290 = vmul.f32 %v213, %v285
    %292 = vset.pattern.permute.xlu0 4
    %293 = vperm.xlu0 %292, %v273
    %v294 = vpop.permute.xlu0 %293
    %297 = vset.pattern.permute.xlu0 4
    %298 = vperm.xlu0 %297, %v274
    %v299 = vpop.permute.xlu0 %298
    %v301 = vadd.f32 %v287, %v294
    %v302 = vadd.f32 %v288, %v299
    %v303 = vadd.f32 %v289, %v294
    %v304 = vadd.f32 %v290, %v299
    %vm305 = vcmp.ge.f32.partialorder %v301, 0.0
    %vm306 = vcmp.ge.f32.partialorder %v302, 0.0
    %vm307 = vcmp.ge.f32.partialorder %v303, 0.0
    %vm308 = vcmp.ge.f32.partialorder %v304, 0.0
    %309 = vset.pattern.permute.xlu0 5
    %310 = vperm.xlu0 %309, %v30
    %v311 = vpop.permute.xlu0 %310
    %313 = vset.pattern.permute.xlu0 5
    %314 = vperm.xlu0 %313, %v31
    %v315 = vpop.permute.xlu0 %314
    %318 = vset.pattern.permute.xlu0 5
    %319 = vperm.xlu0 %318, %v275
    %v320 = vpop.permute.xlu0 %319
    %323 = vset.pattern.permute.xlu0 5
    %324 = vperm.xlu0 %323, %v276
    %v325 = vpop.permute.xlu0 %324
    %v327 = vsel %vm305, %v311, %v320
    %v328 = vsel %vm306, %v315, %v325
    %v329 = vsel %vm307, %v311, %v320
    %v330 = vsel %vm308, %v315, %v325
    %v331 = vmul.f32 %v301, %v327
    %v332 = vmul.f32 %v302, %v328
    %v333 = vmul.f32 %v303, %v329
    %v334 = vmul.f32 %v304, %v330
    %v335 = vadd.f32 %v26, %v331
    %v336 = vadd.f32 %v27, %v332
    %v337 = vadd.f32 %v28, %v333
    %v338 = vadd.f32 %v29, %v334
    %339 = vset.pattern.permute.xlu0 6
    %340 = vperm.xlu0 %339, %v30
    %v341 = vpop.permute.xlu0 %340
    %343 = vset.pattern.permute.xlu0 6
    %344 = vperm.xlu0 %343, %v31
    %v345 = vpop.permute.xlu0 %344
    %v347 = vadd.f32 %v335, %v341
    %v348 = vadd.f32 %v336, %v345
    %v349 = vadd.f32 %v337, %v341
    %v350 = vadd.f32 %v338, %v345
    %351 = vst [vmem:[#allocation6] sm:$0xff] %v347
    %352 = vst [vmem:[#allocation6 + $0x8] sm:$0xff] %v348
    %353 = vst [vmem:[#allocation6 + $0x10] sm:$0xff] %v349
    %354 = vst [vmem:[#allocation6 + $0x18] sm:$0xff] %v350
    // Predicated region
    $region14: #{tpu_custom_call.1} parent=1 // pred_check
      _
    $region15: #{tpu_custom_call.1} parent=1 // pred_check_branch
      %356 = sbr.rel (0) target = $region17
    $region16: #{tpu_custom_call.1} parent=1 // pred_region
      %s358 = ssub.s32 512, 512
      %359 = vsyncadd [#allocation5], %s358
      %s360 = sshll.u32 [#allocation6], 4
      %s361 = int_to_ptr.vmem [resolvable:$true] %s360
      %366 = dma.vmem_to_hbm [thread:$0]  %s361, 512, %s2, [#allocation5], 128, 128, 8
    $region17: #{tpu_custom_call.1} parent=1 // pred_fallthru
      _
    // Predicated region
    $region18: #{tpu_custom_call.1} parent=1 // pred_check
      _
    $region19: #{tpu_custom_call.1} parent=1 // pred_check_branch
      %368 = sbr.rel (0) target = $region21
    $region20: #{tpu_custom_call.1} parent=1 // pred_region
      %369 = dma.done [#allocation5], 512
    $region21: #{tpu_custom_call.1} parent=1 // pred_fallthru
      _
    %370 = vsyncpa [#allocation4], 1
    %371 = vsyncpa [#allocation5], 1

</llo_original>
